<compile_context>
chip_gen: v5e
topology: v5e:2x2
jax: 0.10.0
libtpu: 0.0.40
codegen_flags: <defaults>
</compile_context>

<pallas_src>
import functools

import jax
import jax.numpy as jnp
from jax.experimental import pallas as pl
from jax.experimental.pallas import tpu as pltpu


def _round_up(x: int, m: int) -> int:
    return ((x + m - 1) // m) * m


def _vmem_cap_bytes() -> int:
    """Generation-aware scoped-VMEM budget (safe fallback if query fails)."""
    cap = None
    try:
        info = pltpu.get_tpu_info()
        cap = getattr(info, "vmem_capacity_bytes", None)
    except Exception:
        cap = None
    if cap is None:
        return 48 * 1024 * 1024          # safe everywhere (v7x has 64 MiB physical)
    if cap >= 96 * 1024 * 1024:          # v5e / v6e: 128 MiB physical VMEM
        return 100 * 1024 * 1024
    return 48 * 1024 * 1024              # v7x: 64 MiB physical, leave headroom


_M_TILE_CANDIDATES = (512, 384, 256, 128)
_N_TILE_CANDIDATES = (512, 384, 256, 128)
_K_TILE_CANDIDATES = (1024, 896, 768, 640, 512, 384, 256, 128)


def _pick_tile(dim: int, candidates, align: int) -> int:
    """Pick a tile size minimizing padding waste (ties -> biggest tile)."""
    d = _round_up(max(dim, 1), align)
    if d <= max(candidates):
        return d                          # one block covers the whole axis
    best_t, best_pad = None, None
    for t in candidates:
        pad = _round_up(d, t)
        if best_pad is None or pad < best_pad or (pad == best_pad and t > best_t):
            best_t, best_pad = t, pad
    return best_t


def _linear_kernel(x_ref, w_ref, b_ref, o_ref):
    """One (tm, tn) output tile; K is the innermost ('arbitrary') grid axis.

    The output block index is constant along K, so o_ref stays resident in
    VMEM across the whole K loop and doubles as the f32 accumulator: no
    separate scratch buffer and no epilogue copy.  Bias initializes the tile.
    """
    @pl.when(pl.program_id(2) == 0)
    def _init():
        o_ref[...] = jnp.zeros_like(o_ref) + b_ref[...].astype(o_ref.dtype)

    o_ref[...] += jnp.dot(
        x_ref[...], w_ref[...], preferred_element_type=jnp.float32
    )


@functools.partial(jax.jit, static_argnames=("tm", "tn", "tk", "vmem_limit"))
def _linear_pallas(xp, wt, b2, *, tm, tn, tk, vmem_limit):
    Mp, Kp = xp.shape
    Kp_w, Np = wt.shape
    assert Kp == Kp_w, "padded K mismatch between x and weight"
    grid = (Mp // tm, Np // tn, Kp // tk)

    cost = pl.CostEstimate(
        flops=2 * Mp * Np * Kp,
        transcendentals=0,
        bytes_accessed=(xp.size * xp.dtype.itemsize
                        + wt.size * wt.dtype.itemsize
                        + 4 * Mp * Np + 4 * Np),
    )

    return pl.pallas_call(
        _linear_kernel,
        out_shape=jax.ShapeDtypeStruct((Mp, Np), jnp.float32),
        grid_spec=pltpu.PrefetchScalarGridSpec(
            num_scalar_prefetch=0,
            grid=grid,
            in_specs=[
                pl.BlockSpec((tm, tk), lambda i, j, k: (i, k)),   # x   [M, K]
                pl.BlockSpec((tk, tn), lambda i, j, k: (k, j)),   # W^T [K, N]
                pl.BlockSpec((1, tn), lambda i, j, k: (0, j)),    # bias [1, N]
            ],
            out_specs=pl.BlockSpec((tm, tn), lambda i, j, k: (i, j)),
        ),
        compiler_params=pltpu.CompilerParams(
            dimension_semantics=("parallel", "parallel", "arbitrary"),
            vmem_limit_bytes=vmem_limit,
        ),
        cost_estimate=cost,
    )(xp, wt, b2)


class PallasLinear:
    """Pallas-TPU equivalent of torch.nn.Linear(in_features, out_features).

    The weight is given in PyTorch [Out, In] layout; it is transposed to
    [In, Out] and zero-padded to tile multiples ONCE here, so the per-call
    path only (optionally) pads x.
    """

    def __init__(self, weight, bias, *, use_bf16: bool = False):
        weight = jnp.asarray(weight, dtype=jnp.float32)
        bias = jnp.asarray(bias, dtype=jnp.float32)
        self.out_features, self.in_features = weight.shape
        self.use_bf16 = use_bf16
        self._m_align = 16 if use_bf16 else 8

        self.tn = _pick_tile(self.out_features, _N_TILE_CANDIDATES, 128)
        self.tk = _pick_tile(self.in_features, _K_TILE_CANDIDATES, 128)
        self.Np = _round_up(_round_up(self.out_features, 128), self.tn)
        self.Kp = _round_up(_round_up(self.in_features, 128), self.tk)

        wt = weight.T                                             # [In, Out]
        wt = jnp.pad(wt, ((0, self.Kp - self.in_features),
                          (0, self.Np - self.out_features)))
        self.wt = wt.astype(jnp.bfloat16) if use_bf16 else wt
        b2 = bias.reshape(1, self.out_features)
        self.b2 = jnp.pad(b2, ((0, 0), (0, self.Np - self.out_features)))

        self._vmem_cap = _vmem_cap_bytes()

    def __call__(self, x):
        x = jnp.asarray(x)
        B, In = x.shape
        assert In == self.in_features, "weight / input feature mismatch"

        tm = _pick_tile(B, _M_TILE_CANDIDATES, self._m_align)
        Mp = _round_up(_round_up(B, self._m_align), tm)

        # Megacore / v7x: make sure at least one "parallel" axis has >= 2
        # blocks when the problem is big enough to matter.
        if (Mp // tm == 1 and self.Np // self.tn == 1
                and Mp >= 256 and Mp % (2 * self._m_align) == 0):
            tm = Mp // 2

        xp = x
        if (Mp, self.Kp) != (B, In):
            xp = jnp.pad(x, ((0, Mp - B), (0, self.Kp - In)))
        if self.use_bf16:
            xp = xp.astype(jnp.bfloat16)

        item = 2 if self.use_bf16 else 4
        tile_bytes = (item * (2 * tm * self.tk + 2 * self.tk * self.tn)
                      + 4 * (2 * self.tn + 2 * tm * self.tn))
        vmem_limit = int(min(max(2 * tile_bytes, 16 * 1024 * 1024),
                             self._vmem_cap))

        out = _linear_pallas(xp, self.wt, self.b2,
                             tm=tm, tn=self.tn, tk=self.tk,
                             vmem_limit=vmem_limit)
        if (Mp, self.Np) != (B, self.out_features):
            out = out[:B, :self.out_features]
        return out


if __name__ == "__main__":
    key = jax.random.PRNGKey(0)
    kx, kw, kb, kx2, kw2, kb2 = jax.random.split(key, 6)

    # Case 1: small shapes consistent with the module: linear(32, 16), batch=8.
    B, IN, OUT = 8, 32, 16
    bound = 1.0 / (IN ** 0.5)
    x = jax.random.normal(kx, (B, IN), dtype=jnp.float32)
    w = jax.random.uniform(kw, (OUT, IN), jnp.float32, -bound, bound)
    b = jax.random.uniform(kb, (OUT,), jnp.float32, -bound, bound)

    lin = PallasLinear(w, b)
    y = jax.block_until_ready(lin(x))
    y_ref = x @ w.T + b
    assert y.shape == (B, OUT)
    assert jnp.allclose(y, y_ref, atol=1e-5, rtol=1e-5), "case 1 mismatch"

    # Case 2: ragged shapes to exercise adaptive tiling / padding paths.
    B2, IN2, OUT2 = 37, 200, 120
    bound2 = 1.0 / (IN2 ** 0.5)
    x2 = jax.random.normal(kx2, (B2, IN2), dtype=jnp.float32)
    w2 = jax.random.uniform(kw2, (OUT2, IN2), jnp.float32, -bound2, bound2)
    b2 = jax.random.uniform(kb2, (OUT2,), jnp.float32, -bound2, bound2)

    lin2 = PallasLinear(w2, b2)
    y2 = jax.block_until_ready(lin2(x2))
    y2_ref = x2 @ w2.T + b2
    assert y2.shape == (B2, OUT2)
    assert jnp.allclose(y2, y2_ref, atol=1e-4, rtol=1e-4), "case 2 mismatch"

    print("KERNEL_OK")
</pallas_src>

<mosaic_0001>
module attributes {stable_mosaic.version = 11 : i64} {
  func.func @_linear_kernel(%arg0: i32, %arg1: i32, %arg2: i32, %arg3: memref<8x128xf32, #tpu.memory_space<vmem>>, %arg4: memref<128x128xf32, #tpu.memory_space<vmem>>, %arg5: memref<1x128xf32, #tpu.memory_space<vmem>>, %arg6: memref<8x128xf32, #tpu.memory_space<vmem>>) attributes {dimension_semantics = [#tpu.dimension_semantics<parallel>, #tpu.dimension_semantics<parallel>, #tpu.dimension_semantics<arbitrary>], iteration_bounds = array<i64: 1, 1, 1>, scalar_prefetch = 0 : i64, scratch_operands = 0 : i64, tpu.core_type = #tpu.core_type<tc>, window_params = [{transform_indices = @transform_0, window_bounds = array<i64: 8, 128>}, {transform_indices = @transform_1, window_bounds = array<i64: 128, 128>}, {transform_indices = @transform_2, window_bounds = array<i64: 1, 128>}, {transform_indices = @transform_3, window_bounds = array<i64: 8, 128>}]} {
    %c0_i32 = arith.constant 0 : i32
    %0 = arith.cmpi eq, %arg2, %c0_i32 : i32
    %1 = arith.extui %0 : i1 to i32
    %c0_i32_0 = arith.constant 0 : i32
    %2 = arith.cmpi ne, %1, %c0_i32_0 : i32
    scf.if %2 {
      %cst_8 = arith.constant 0.000000e+00 : f32
      %9 = vector.broadcast %cst_8 : f32 to vector<8x128xf32>
      %c0_9 = arith.constant 0 : index
      %c0_10 = arith.constant 0 : index
      %10 = vector.load %arg5[%c0_9, %c0_10] : memref<1x128xf32, #tpu.memory_space<vmem>>, vector<1x128xf32>
      %11 = vector.broadcast %10 : vector<1x128xf32> to vector<8x128xf32>
      %12 = arith.addf %9, %11 : vector<8x128xf32>
      %c0_11 = arith.constant 0 : index
      %c0_12 = arith.constant 0 : index
      %13 = vector.load %arg6[%c0_11, %c0_12] : memref<8x128xf32, #tpu.memory_space<vmem>>, vector<8x128xf32>
      tpu.vector_store %arg6[%c0_11, %c0_12], %12 {strides = array<i32>} : memref<8x128xf32, #tpu.memory_space<vmem>>, vector<8x128xf32>,
    } else {
    }
    %c0 = arith.constant 0 : index
    %c0_1 = arith.constant 0 : index
    %3 = vector.load %arg6[%c0, %c0_1] : memref<8x128xf32, #tpu.memory_space<vmem>>, vector<8x128xf32>
    %c0_2 = arith.constant 0 : index
    %c0_3 = arith.constant 0 : index
    %4 = vector.load %arg3[%c0_2, %c0_3] : memref<8x128xf32, #tpu.memory_space<vmem>>, vector<8x128xf32>
    %c0_4 = arith.constant 0 : index
    %c0_5 = arith.constant 0 : index
    %5 = vector.load %arg4[%c0_4, %c0_5] : memref<128x128xf32, #tpu.memory_space<vmem>>, vector<128x128xf32>
    %cst = arith.constant dense<0.000000e+00> : vector<8x128xf32>
    %6 = tpu.matmul %4, %5, %cst {dimension_numbers = #tpu.dot_dimension_numbers<[1], [0], [0], [1], [0, 0, 1, 1], [], []>} : vector<8x128xf32>, vector<128x128xf32>, vector<8x128xf32> -> vector<8x128xf32>
    %7 = arith.addf %3, %6 : vector<8x128xf32>
    %c0_6 = arith.constant 0 : index
    %c0_7 = arith.constant 0 : index
    %8 = vector.load %arg6[%c0_6, %c0_7] : memref<8x128xf32, #tpu.memory_space<vmem>>, vector<8x128xf32>
    tpu.vector_store %arg6[%c0_6, %c0_7], %7 {strides = array<i32>} : memref<8x128xf32, #tpu.memory_space<vmem>>, vector<8x128xf32>,
    return
  }
  func.func @transform_0(%arg0: i32, %arg1: i32, %arg2: i32) -> (i32, i32) {
    %c0_i32 = arith.constant 0 : i32
    return %arg0, %arg2 : i32, i32
  }
  func.func @transform_1(%arg0: i32, %arg1: i32, %arg2: i32) -> (i32, i32) {
    %c0_i32 = arith.constant 0 : i32
    return %arg2, %arg1 : i32, i32
  }
  func.func @transform_2(%arg0: i32, %arg1: i32, %arg2: i32) -> (i32, i32) {
    %c0_i32 = arith.constant 0 : i32
    %c0_i32_0 = arith.constant 0 : i32
    return %c0_i32, %arg1 : i32, i32
  }
  func.func @transform_3(%arg0: i32, %arg1: i32, %arg2: i32) -> (i32, i32) {
    %c0_i32 = arith.constant 0 : i32
    return %arg0, %arg1 : i32, i32
  }
}

</mosaic_0001>

<llo_original>
// kernel: _linear_pallas.1
$region0: #{_linear_pallas.1}
  #allocation0 [shape = 'u32[]', space=smem, size = 0x4, offset = 0x4, fixed_abs, tag = 'smem constant byte address 0x4 - core index']
  #allocation1 [shape = 'u32[72,128]{1,0:T(1,128)}', space=vmem, size = 0x9000, scoped, tag = 'internal scratch']
  %s0 = inlined_call_operand.hbm [shape: f32[8,128], index: 0, kind: input, shape index: {}]
  %s1 = inlined_call_operand.hbm [shape: f32[128,128], index: 1, kind: input, shape index: {}]
  %s2 = inlined_call_operand.vmem [shape: f32[1,128], index: 2, kind: input, shape index: {}]
  %s3 = inlined_call_operand.hbm [shape: f32[8,128], index: 3, kind: output, shape index: {}]
  %s4 = sld [smem:[#allocation0]]
  $region34: #{_linear_pallas.1} parent=0
    _
  %s6 = ssub.s32 1, %s4
  %s7 = scalar_select 0, %s6, %s4
  $region1: #{_linear_pallas.1} parent=0
    #allocation2 [shape = 'u8[4096]{0}', space=vmem, size = 0x1000, scoped, tag = 'input window, operand 0, single buffered']
    #allocation3 [shape = 's32[1]{0}', space=sflag, size = 0x4, scoped, tag = 'scoped memory for _linear_pallas.1']
    #allocation4 [shape = 's32[1]{0}', space=sflag, size = 0x4, scoped, tag = 'scoped memory for _linear_pallas.1']
    #allocation5 [shape = 'u8[65536]{0}', space=vmem, size = 0x10000, scoped, tag = 'input window, operand 1, single buffered']
    #allocation6 [shape = 's32[1]{0}', space=sflag, size = 0x4, scoped, tag = 'scoped memory for _linear_pallas.1']
    #allocation7 [shape = 'u8[4096]{0}', space=vmem, size = 0x1000, scoped, tag = 'output window, operand 0, single buffered']
    %8 = vsyncpa [#allocation3], 0
    %9 = vsyncpa [#allocation6], 0
    %10 = vsyncpa [#allocation4], 0
    // Predicated region
    $region2: #{_linear_pallas.1} parent=1 // pred_check
      _
    $region3: #{_linear_pallas.1} parent=1 // pred_check_branch
      %12 = sbr.rel (0) target = $region5
    $region4: #{_linear_pallas.1} parent=1 // pred_region
      %14 = vsyncadd [#allocation3], 0
      %s16 = sshll.u32 %s0, 4
      %s17 = int_to_ptr.hbm [resolvable:$true] %s16
      %s18 = sshll.u32 [#allocation2], 4
      %s19 = int_to_ptr.vmem [resolvable:$true] %s18
      %21 = dma.hbm_to_vmem [thread:$0]  %s17, 128, %s19, [#allocation3]
    $region5: #{_linear_pallas.1} parent=1 // pred_fallthru
      _
    // Predicated region
    $region6: #{_linear_pallas.1} parent=1 // pred_check
      _
    $region7: #{_linear_pallas.1} parent=1 // pred_check_branch
      %23 = sbr.rel (0) target = $region9
    $region8: #{_linear_pallas.1} parent=1 // pred_region
      %25 = vsyncadd [#allocation6], 0
      %s26 = sshll.u32 %s1, 4
      %s27 = int_to_ptr.hbm [resolvable:$true] %s26
      %s28 = sshll.u32 [#allocation5], 4
      %s29 = int_to_ptr.vmem [resolvable:$true] %s28
      %34 = dma.hbm_to_vmem [thread:$0]  %s27, 2048, %s29, [#allocation6], 128, 128, 8
    $region9: #{_linear_pallas.1} parent=1 // pred_fallthru
      _
    // Predicated region
    $region10: #{_linear_pallas.1} parent=1 // pred_check
      _
    $region11: #{_linear_pallas.1} parent=1 // pred_check_branch
      %36 = sbr.rel (0) target = $region13
    $region12: #{_linear_pallas.1} parent=1 // pred_region
      _
    $region13: #{_linear_pallas.1} parent=1 // pred_fallthru
      _
    // Predicated region
    $region14: #{_linear_pallas.1} parent=1 // pred_check
      _
    $region15: #{_linear_pallas.1} parent=1 // pred_check_branch
      %38 = sbr.rel (0) target = $region17
    $region16: #{_linear_pallas.1} parent=1 // pred_region
      %40 = dma.done [#allocation3], 128
    $region17: #{_linear_pallas.1} parent=1 // pred_fallthru
      _
    // Predicated region
    $region18: #{_linear_pallas.1} parent=1 // pred_check
      _
    $region19: #{_linear_pallas.1} parent=1 // pred_check_branch
      %42 = sbr.rel (0) target = $region21
    $region20: #{_linear_pallas.1} parent=1 // pred_region
      %44 = dma.done [#allocation6], 2048
    $region21: #{_linear_pallas.1} parent=1 // pred_fallthru
      _
    %p45 = scmp.eq.s32.totalorder 0, 0
    // Predicated region
    $region22: #{_linear_pallas.1} parent=1 // pred_check
      %p46 = pneg %p45
    $region23: #{_linear_pallas.1} parent=1 // pred_check_branch
      %48 = sbr.rel (%p46) target = $region25
    $region24: #{_linear_pallas.1} parent=1 // pred_region
      %v49 = vld [vmem:[%s2] sm:$0x1]
      %v51 = vperm.slane %v49, 0
      %v53 = vadd.f32 %v51, 0.0
      %54 = vst [vmem:[#allocation7] sm:$0xff] %v53
    $region25: #{_linear_pallas.1} parent=1 // pred_fallthru
      _
    %v55 = vld [vmem:[#allocation7] sm:$0xff]
    %v56 = vld [vmem:[#allocation2] sm:$0xff]
    %v57 = vld [vmem:[#allocation5] sm:$0xff]
    %v58 = vld [vmem:[#allocation5 + $0x8] sm:$0xff]
    %v59 = vld [vmem:[#allocation5 + $0x10] sm:$0xff]
    %v60 = vld [vmem:[#allocation5 + $0x18] sm:$0xff]
    %v61 = vld [vmem:[#allocation5 + $0x20] sm:$0xff]
    %v62 = vld [vmem:[#allocation5 + $0x28] sm:$0xff]
    %v63 = vld [vmem:[#allocation5 + $0x30] sm:$0xff]
    %v64 = vld [vmem:[#allocation5 + $0x38] sm:$0xff]
    %v65 = vld [vmem:[#allocation5 + $0x40] sm:$0xff]
    %v66 = vld [vmem:[#allocation5 + $0x48] sm:$0xff]
    %v67 = vld [vmem:[#allocation5 + $0x50] sm:$0xff]
    %v68 = vld [vmem:[#allocation5 + $0x58] sm:$0xff]
    %v69 = vld [vmem:[#allocation5 + $0x60] sm:$0xff]
    %v70 = vld [vmem:[#allocation5 + $0x68] sm:$0xff]
    %v71 = vld [vmem:[#allocation5 + $0x70] sm:$0xff]
    %v72 = vld [vmem:[#allocation5 + $0x78] sm:$0xff]
    %73 = vmatpush.msra.mxu0 %v72
    %74 = vmatpush.msra.mxu0 %v71
    %75 = vmatpush.msra.mxu0 %v70
    %76 = vmatpush.msra.mxu0 %v69
    %77 = vmatpush.msra.mxu0 %v68
    %78 = vmatpush.msra.mxu0 %v67
    %79 = vmatpush.msra.mxu0 %v66
    %80 = vmatpush.msra.mxu0 %v65
    %81 = vmatpush.msra.mxu0 %v64
    %82 = vmatpush.msra.mxu0 %v63
    %83 = vmatpush.msra.mxu0 %v62
    %84 = vmatpush.msra.mxu0 %v61
    %85 = vmatpush.msra.mxu0 %v60
    %86 = vmatpush.msra.mxu0 %v59
    %87 = vmatpush.msra.mxu0 %v58
    %88 = vmatpush.msra.mxu0 %v57
    %89 = vmatmul.f32.gmra.mxu0 %v56
    %v90 = vpop.f32.mrf.mxu0
    %v91 = vadd.f32 0.0, %v90
    %92 = vdwg.mxu0
    %v93 = vadd.f32 %v55, %v91
    %94 = vst [vmem:[#allocation7] sm:$0xff] %v93
    // Predicated region
    $region26: #{_linear_pallas.1} parent=1 // pred_check
      _
    $region27: #{_linear_pallas.1} parent=1 // pred_check_branch
      %96 = sbr.rel (0) target = $region29
    $region28: #{_linear_pallas.1} parent=1 // pred_region
      %98 = vsyncadd [#allocation4], 0
      %s100 = sshll.u32 [#allocation7], 4
      %s101 = int_to_ptr.vmem [resolvable:$true] %s100
      %s102 = sshll.u32 %s3, 4
      %s103 = int_to_ptr.hbm [resolvable:$true] %s102
      %105 = dma.vmem_to_hbm [thread:$0]  %s101, 128, %s103, [#allocation4]
    $region29: #{_linear_pallas.1} parent=1 // pred_fallthru
      _
    // Predicated region
    $region30: #{_linear_pallas.1} parent=1 // pred_check
      _
    $region31: #{_linear_pallas.1} parent=1 // pred_check_branch
      %107 = sbr.rel (0) target = $region33
    $region32: #{_linear_pallas.1} parent=1 // pred_region
      %109 = dma.done [#allocation4], 128
    $region33: #{_linear_pallas.1} parent=1 // pred_fallthru
      _
    %110 = vsyncpa [#allocation3], 1
    %111 = vsyncpa [#allocation6], 1
    %112 = vsyncpa [#allocation4], 1

</llo_original>
